<compile_context>
chip_gen: v7x
topology: tpu7x:2x2x1
jax: 0.10.0
libtpu: 0.0.40
codegen_flags: <defaults>
</compile_context>

<pallas_src>
import functools

import jax
import jax.numpy as jnp
from jax.experimental import pallas as pl
from jax.experimental.pallas import tpu as pltpu


# -----------------------------------------------------------------------------
# Kernel
# -----------------------------------------------------------------------------
_GELU_C = 0.7978845608028654  # sqrt(2/pi)


def _gelu_new(x):
    # HuggingFace "gelu_new": 0.5*x*(1+tanh(sqrt(2/pi)*(x + 0.044715*x^3)))
    return 0.5 * x * (1.0 + jnp.tanh(_GELU_C * (x + 0.044715 * x * x * x)))


def lm_head_kernel(x_ref, w1_ref, b1_ref, g_ref, beta_ref, wd_ref, bd_ref,
                   o_ref, h_ref, *, eps):
    # Grid: (row tile i, vocab tile j). j is innermost -> recompute the row-tile
    # intermediate only when j == 0 and reuse it (VMEM scratch) for all j.
    @pl.when(pl.program_id(1) == 0)
    def _():
        # dense: [TM, D] @ [D, E] -> f32 accumulate on the MXU.
        h = jnp.dot(x_ref[...], w1_ref[...], preferred_element_type=jnp.float32)
        h = h + b1_ref[...].astype(jnp.float32)
        h = _gelu_new(h)
        # Fused one-pass LayerNorm statistics (var = E[h^2] - mean^2), f32.
        mean = jnp.mean(h, axis=-1, keepdims=True)
        var = jnp.mean(h * h, axis=-1, keepdims=True) - mean * mean
        h = (h - mean) * jax.lax.rsqrt(var + eps)
        h_ref[...] = (h * g_ref[...].astype(jnp.float32)
                      + beta_ref[...].astype(jnp.float32))

    # Decoder tile: cast the small h tile to the decoder weight's native dtype
    # (bf16 fast path) instead of up-casting the big weight tile to f32.
    h = h_ref[...].astype(wd_ref.dtype)
    logits = jnp.dot(h, wd_ref[...], preferred_element_type=jnp.float32)
    o_ref[...] = (logits + bd_ref[...].astype(jnp.float32)).astype(o_ref.dtype)


# -----------------------------------------------------------------------------
# Wrapper
# -----------------------------------------------------------------------------
def _pick_tile(total, cap, align):
    """Largest multiple of `align` <= cap that divides `total`; falls back to
    the full extent (full-dim escape hatch of the (8,128) rule)."""
    t = min(cap, total)
    t = (t // align) * align
    while t >= align and total % t != 0:
        t -= align
    if t < align or total % t != 0:
        return total
    return t


def lm_prediction_head(sequence_output, params, *, eps=1e-12,
                       tm=256, tv=512, out_dtype=None, vmem_limit_bytes=None):
    """sequence_output: [..., D]; returns [..., V].

    Tile-size guidance (set tm/tv per generation):
      v7x : tv=1024, tm=256 (bf16 weights)   -- 64 MiB physical VMEM
      v6e : tv=2048, tm=256-512, raise vmem_limit_bytes (~64-96 MiB)
      v5e : tv=512-1024, tm=128-256, raise vmem_limit_bytes above 16 MiB default
    """
    *lead, D = sequence_output.shape
    E = params["dense_w"].shape[1]
    V = params["decoder_w"].shape[1]
    N = 1
    for d in lead:
        N *= d

    # Feed activations to the MXU in the dense weight's dtype (bf16 fast path).
    x2d = sequence_output.reshape(N, D).astype(params["dense_w"].dtype)
    out_dtype = out_dtype or sequence_output.dtype

    TM = _pick_tile(N, tm, 8)
    TV = _pick_tile(V, tv, 128)
    grid = (N // TM, V // TV)

    cp_kwargs = dict(dimension_semantics=("parallel", "arbitrary"))
    if vmem_limit_bytes is not None:
        cp_kwargs["vmem_limit_bytes"] = vmem_limit_bytes

    out = pl.pallas_call(
        functools.partial(lm_head_kernel, eps=eps),
        out_shape=jax.ShapeDtypeStruct((N, V), out_dtype),
        grid_spec=pltpu.PrefetchScalarGridSpec(
            num_scalar_prefetch=0,
            grid=grid,
            in_specs=[
                pl.BlockSpec((TM, D), lambda i, j: (i, 0)),   # x row tile
                pl.BlockSpec((D, E), lambda i, j: (0, 0)),    # dense weight (resident)
                pl.BlockSpec((1, E), lambda i, j: (0, 0)),    # dense bias
                pl.BlockSpec((1, E), lambda i, j: (0, 0)),    # LN gamma
                pl.BlockSpec((1, E), lambda i, j: (0, 0)),    # LN beta
                pl.BlockSpec((E, TV), lambda i, j: (0, j)),   # decoder weight tile
                pl.BlockSpec((1, TV), lambda i, j: (0, j)),   # vocab bias tile
            ],
            out_specs=pl.BlockSpec((TM, TV), lambda i, j: (i, j)),
            scratch_shapes=[pltpu.VMEM((TM, E), jnp.float32)],  # h, reused over j
        ),
        compiler_params=pltpu.CompilerParams(**cp_kwargs),
    )(
        x2d,
        params["dense_w"], params["dense_b"].reshape(1, E),
        params["ln_g"].reshape(1, E), params["ln_b"].reshape(1, E),
        params["decoder_w"], params["vocab_bias"].reshape(1, V),
    )
    return out.reshape(*lead, V)


# -----------------------------------------------------------------------------
# Pure-JAX reference (for the correctness check)
# -----------------------------------------------------------------------------
def lm_prediction_head_ref(sequence_output, params, eps=1e-12):
    x = sequence_output.astype(jnp.float32)
    h = x @ params["dense_w"].astype(jnp.float32) + params["dense_b"]
    h = _gelu_new(h)
    mean = h.mean(-1, keepdims=True)
    var = ((h - mean) ** 2).mean(-1, keepdims=True)
    h = (h - mean) * jax.lax.rsqrt(var + eps) * params["ln_g"] + params["ln_b"]
    return h @ params["decoder_w"].astype(jnp.float32) + params["vocab_bias"]


# -----------------------------------------------------------------------------
# Deterministic parameter init + demo
# -----------------------------------------------------------------------------
def init_params(key, dim, embedding_dim, vocab_size, dtype=jnp.float32):
    ks = jax.random.split(key, 3)
    scale = 0.02
    return {
        # dense : Linear(dim -> embedding_dim), stored [in, out]
        "dense_w": (scale * jax.random.normal(ks[0], (dim, embedding_dim),
                                              jnp.float32)).astype(dtype),
        "dense_b": scale * jax.random.normal(ks[1], (embedding_dim,), jnp.float32),
        # LayerNorm(embedding_dim)
        "ln_g": jnp.ones((embedding_dim,), jnp.float32),
        "ln_b": jnp.zeros((embedding_dim,), jnp.float32),
        # decoder : Linear(embedding_dim -> vocab_size, bias=False), stored [in, out]
        "decoder_w": (scale * jax.random.normal(ks[2], (embedding_dim, vocab_size),
                                                jnp.float32)).astype(dtype),
        # separate bias Parameter(zeros(vocab_size))
        "vocab_bias": jnp.zeros((vocab_size,), jnp.float32),
    }


if __name__ == "__main__":
    # Small shapes: batch=2, seq=8, dim=128, embedding_dim=256, vocab=512.
    B, S, DIM, EMB, VOCAB = 2, 8, 128, 256, 512

    key = jax.random.PRNGKey(0)
    k_params, k_seq = jax.random.split(key, 2)

    params = init_params(k_params, DIM, EMB, VOCAB, dtype=jnp.float32)
    sequence_output = jax.random.normal(k_seq, (B, S, DIM), jnp.float32)

    # tm=8, tv=256 so the small demo exercises both grid axes (grid = (2, 2)):
    # scratch reuse across vocab tiles and row-parallel tiles.
    pred_scores = lm_prediction_head(sequence_output, params,
                                     eps=1e-12, tm=8, tv=256)
    pred_scores = jax.block_until_ready(pred_scores)

    assert pred_scores.shape == (B, S, VOCAB)

    ref = lm_prediction_head_ref(sequence_output, params, eps=1e-12)
    assert jnp.allclose(pred_scores.astype(jnp.float32), ref,
                        rtol=1e-3, atol=1e-3), "mismatch vs pure-JAX reference"

    print("KERNEL_OK")
</pallas_src>

<mosaic_0001>
module attributes {stable_mosaic.version = 11 : i64} {
  func.func @lm_head_kernel(%arg0: i32, %arg1: i32, %arg2: memref<8x128xf32, #tpu.memory_space<vmem>>, %arg3: memref<128x256xf32, #tpu.memory_space<vmem>>, %arg4: memref<1x256xf32, #tpu.memory_space<vmem>>, %arg5: memref<1x256xf32, #tpu.memory_space<vmem>>, %arg6: memref<1x256xf32, #tpu.memory_space<vmem>>, %arg7: memref<256x256xf32, #tpu.memory_space<vmem>>, %arg8: memref<1x256xf32, #tpu.memory_space<vmem>>, %arg9: memref<8x256xf32, #tpu.memory_space<vmem>>, %arg10: memref<8x256xf32, #tpu.memory_space<vmem>>) attributes {dimension_semantics = [#tpu.dimension_semantics<parallel>, #tpu.dimension_semantics<arbitrary>], iteration_bounds = array<i64: 2, 2>, scalar_prefetch = 0 : i64, scratch_operands = 1 : i64, tpu.core_type = #tpu.core_type<tc>, window_params = [{transform_indices = @transform_0, window_bounds = array<i64: 8, 128>}, {pipeline_mode = #tpu.pipeline_mode<synchronous>, transform_indices = @transform_1, window_bounds = array<i64: 128, 256>}, {pipeline_mode = #tpu.pipeline_mode<synchronous>, transform_indices = @transform_2, window_bounds = array<i64: 1, 256>}, {pipeline_mode = #tpu.pipeline_mode<synchronous>, transform_indices = @transform_3, window_bounds = array<i64: 1, 256>}, {pipeline_mode = #tpu.pipeline_mode<synchronous>, transform_indices = @transform_4, window_bounds = array<i64: 1, 256>}, {transform_indices = @transform_5, window_bounds = array<i64: 256, 256>}, {transform_indices = @transform_6, window_bounds = array<i64: 1, 256>}, {transform_indices = @transform_7, window_bounds = array<i64: 8, 256>}]} {
    %c0_i32 = arith.constant 0 : i32
    %0 = arith.cmpi eq, %arg1, %c0_i32 : i32
    %1 = arith.extui %0 : i1 to i32
    %c0_i32_0 = arith.constant 0 : i32
    %2 = arith.cmpi ne, %1, %c0_i32_0 : i32
    scf.if %2 {
      %c0_8 = arith.constant 0 : index
      %c0_9 = arith.constant 0 : index
      %10 = vector.load %arg2[%c0_8, %c0_9] : memref<8x128xf32, #tpu.memory_space<vmem>>, vector<8x128xf32>
      %c0_10 = arith.constant 0 : index
      %c0_11 = arith.constant 0 : index
      %11 = vector.load %arg3[%c0_10, %c0_11] : memref<128x256xf32, #tpu.memory_space<vmem>>, vector<128x256xf32>
      %cst_12 = arith.constant dense<0.000000e+00> : vector<8x256xf32>
      %12 = tpu.matmul %10, %11, %cst_12 {dimension_numbers = #tpu.dot_dimension_numbers<[1], [0], [0], [1], [0, 0, 1, 1], [], []>} : vector<8x128xf32>, vector<128x256xf32>, vector<8x256xf32> -> vector<8x256xf32>
      %c0_13 = arith.constant 0 : index
      %c0_14 = arith.constant 0 : index
      %13 = vector.load %arg4[%c0_13, %c0_14] : memref<1x256xf32, #tpu.memory_space<vmem>>, vector<1x256xf32>
      %14 = vector.broadcast %13 : vector<1x256xf32> to vector<8x256xf32>
      %15 = arith.addf %12, %14 : vector<8x256xf32>
      %cst_15 = arith.constant 5.000000e-01 : f32
      %16 = vector.broadcast %cst_15 : f32 to vector<8x256xf32>
      %17 = arith.mulf %16, %15 : vector<8x256xf32>
      %cst_16 = arith.constant 4.471500e-02 : f32
      %18 = vector.broadcast %cst_16 : f32 to vector<8x256xf32>
      %19 = arith.mulf %18, %15 : vector<8x256xf32>
      %20 = arith.mulf %19, %15 : vector<8x256xf32>
      %21 = arith.mulf %20, %15 : vector<8x256xf32>
      %22 = arith.addf %15, %21 : vector<8x256xf32>
      %cst_17 = arith.constant 0.797884583 : f32
      %23 = vector.broadcast %cst_17 : f32 to vector<8x256xf32>
      %24 = arith.mulf %23, %22 : vector<8x256xf32>
      %25 = math.tanh %24 : vector<8x256xf32>
      %cst_18 = arith.constant 1.000000e+00 : f32
      %26 = vector.broadcast %cst_18 : f32 to vector<8x256xf32>
      %27 = arith.addf %26, %25 : vector<8x256xf32>
      %28 = arith.mulf %17, %27 : vector<8x256xf32>
      %cst_19 = arith.constant dense<0.000000e+00> : vector<8xf32>
      %29 = vector.multi_reduction <add>, %28, %cst_19 [1] : vector<8x256xf32> to vector<8xf32>
      %30 = vector.shape_cast %29 : vector<8xf32> to vector<8x1xf32>
      %cst_20 = arith.constant 2.560000e+02 : f32
      %31 = vector.broadcast %cst_20 : f32 to vector<8x1xf32>
      %32 = arith.divf %30, %31 : vector<8x1xf32>
      %33 = arith.mulf %28, %28 : vector<8x256xf32>
      %cst_21 = arith.constant dense<0.000000e+00> : vector<8xf32>
      %34 = vector.multi_reduction <add>, %33, %cst_21 [1] : vector<8x256xf32> to vector<8xf32>
      %35 = vector.shape_cast %34 : vector<8xf32> to vector<8x1xf32>
      %cst_22 = arith.constant 2.560000e+02 : f32
      %36 = vector.broadcast %cst_22 : f32 to vector<8x1xf32>
      %37 = arith.divf %35, %36 : vector<8x1xf32>
      %38 = arith.mulf %32, %32 : vector<8x1xf32>
      %39 = arith.subf %37, %38 : vector<8x1xf32>
      %40 = vector.broadcast %32 : vector<8x1xf32> to vector<8x256xf32>
      %41 = arith.subf %28, %40 : vector<8x256xf32>
      %cst_23 = arith.constant 9.99999996E-13 : f32
      %42 = vector.broadcast %cst_23 : f32 to vector<8x1xf32>
      %43 = arith.addf %39, %42 : vector<8x1xf32>
      %44 = math.rsqrt %43 : vector<8x1xf32>
      %45 = vector.broadcast %44 : vector<8x1xf32> to vector<8x256xf32>
      %46 = arith.mulf %41, %45 : vector<8x256xf32>
      %c0_24 = arith.constant 0 : index
      %c0_25 = arith.constant 0 : index
      %47 = vector.load %arg5[%c0_24, %c0_25] : memref<1x256xf32, #tpu.memory_space<vmem>>, vector<1x256xf32>
      %48 = vector.broadcast %47 : vector<1x256xf32> to vector<8x256xf32>
      %49 = arith.mulf %46, %48 : vector<8x256xf32>
      %c0_26 = arith.constant 0 : index
      %c0_27 = arith.constant 0 : index
      %50 = vector.load %arg6[%c0_26, %c0_27] : memref<1x256xf32, #tpu.memory_space<vmem>>, vector<1x256xf32>
      %51 = vector.broadcast %50 : vector<1x256xf32> to vector<8x256xf32>
      %52 = arith.addf %49, %51 : vector<8x256xf32>
      %c0_28 = arith.constant 0 : index
      %c0_29 = arith.constant 0 : index
      %53 = vector.load %arg10[%c0_28, %c0_29] : memref<8x256xf32, #tpu.memory_space<vmem>>, vector<8x256xf32>
      tpu.vector_store %arg10[%c0_28, %c0_29], %52 {strides = array<i32>} : memref<8x256xf32, #tpu.memory_space<vmem>>, vector<8x256xf32>,
    } else {
    }
    %c0 = arith.constant 0 : index
    %c0_1 = arith.constant 0 : index
    %3 = vector.load %arg10[%c0, %c0_1] : memref<8x256xf32, #tpu.memory_space<vmem>>, vector<8x256xf32>
    %c0_2 = arith.constant 0 : index
    %c0_3 = arith.constant 0 : index
    %4 = vector.load %arg7[%c0_2, %c0_3] : memref<256x256xf32, #tpu.memory_space<vmem>>, vector<256x256xf32>
    %cst = arith.constant dense<0.000000e+00> : vector<8x256xf32>
    %5 = tpu.matmul %3, %4, %cst {dimension_numbers = #tpu.dot_dimension_numbers<[1], [0], [0], [1], [0, 0, 1, 1], [], []>} : vector<8x256xf32>, vector<256x256xf32>, vector<8x256xf32> -> vector<8x256xf32>
    %c0_4 = arith.constant 0 : index
    %c0_5 = arith.constant 0 : index
    %6 = vector.load %arg8[%c0_4, %c0_5] : memref<1x256xf32, #tpu.memory_space<vmem>>, vector<1x256xf32>
    %7 = vector.broadcast %6 : vector<1x256xf32> to vector<8x256xf32>
    %8 = arith.addf %5, %7 : vector<8x256xf32>
    %c0_6 = arith.constant 0 : index
    %c0_7 = arith.constant 0 : index
    %9 = vector.load %arg9[%c0_6, %c0_7] : memref<8x256xf32, #tpu.memory_space<vmem>>, vector<8x256xf32>
    tpu.vector_store %arg9[%c0_6, %c0_7], %8 {strides = array<i32>} : memref<8x256xf32, #tpu.memory_space<vmem>>, vector<8x256xf32>,
    return
  }
  func.func @transform_0(%arg0: i32, %arg1: i32) -> (i32, i32) {
    %c0_i32 = arith.constant 0 : i32
    %c0_i32_0 = arith.constant 0 : i32
    return %arg0, %c0_i32 : i32, i32
  }
  func.func @transform_1(%arg0: i32, %arg1: i32) -> (i32, i32) {
    %c0_i32 = arith.constant 0 : i32
    %c0_i32_0 = arith.constant 0 : i32
    %c0_i32_1 = arith.constant 0 : i32
    return %c0_i32, %c0_i32_0 : i32, i32
  }
  func.func @transform_2(%arg0: i32, %arg1: i32) -> (i32, i32) {
    %c0_i32 = arith.constant 0 : i32
    %c0_i32_0 = arith.constant 0 : i32
    %c0_i32_1 = arith.constant 0 : i32
    return %c0_i32, %c0_i32_0 : i32, i32
  }
  func.func @transform_3(%arg0: i32, %arg1: i32) -> (i32, i32) {
    %c0_i32 = arith.constant 0 : i32
    %c0_i32_0 = arith.constant 0 : i32
    %c0_i32_1 = arith.constant 0 : i32
    return %c0_i32, %c0_i32_0 : i32, i32
  }
  func.func @transform_4(%arg0: i32, %arg1: i32) -> (i32, i32) {
    %c0_i32 = arith.constant 0 : i32
    %c0_i32_0 = arith.constant 0 : i32
    %c0_i32_1 = arith.constant 0 : i32
    return %c0_i32, %c0_i32_0 : i32, i32
  }
  func.func @transform_5(%arg0: i32, %arg1: i32) -> (i32, i32) {
    %c0_i32 = arith.constant 0 : i32
    %c0_i32_0 = arith.constant 0 : i32
    return %c0_i32, %arg1 : i32, i32
  }
  func.func @transform_6(%arg0: i32, %arg1: i32) -> (i32, i32) {
    %c0_i32 = arith.constant 0 : i32
    %c0_i32_0 = arith.constant 0 : i32
    return %c0_i32, %arg1 : i32, i32
  }
  func.func @transform_7(%arg0: i32, %arg1: i32) -> (i32, i32) {
    %c0_i32 = arith.constant 0 : i32
    return %arg0, %arg1 : i32, i32
  }
}

</mosaic_0001>

<llo_original>
// kernel: tpu_custom_call.1
$region0: #{tpu_custom_call.1}
  #allocation0 [shape = 'u32[]', space=smem, size = 0x4, offset = 0x4, fixed_abs, tag = 'smem constant byte address 0x4 - core index']
  #allocation1 [shape = 'u32[144,128]{1,0:T(1,128)}', space=vmem, size = 0x12000, scoped, tag = 'internal scratch']
  #allocation2 [shape = 'f32[8,256]{1,0:T(8,128)}', space=vmem, size = 0x2000, scoped, tag = 'scratch operand']
  %s0 = inlined_call_operand.hbm [shape: f32[16,128], index: 0, kind: input, shape index: {}]
  %s1 = inlined_call_operand.hbm [shape: f32[128,256], index: 1, kind: input, shape index: {}]
  %s2 = inlined_call_operand.vmem [shape: f32[1,256], index: 2, kind: input, shape index: {}]
  %s3 = inlined_call_operand.vmem [shape: f32[1,256], index: 3, kind: input, shape index: {}]
  %s4 = inlined_call_operand.vmem [shape: f32[1,256], index: 4, kind: input, shape index: {}]
  %s5 = inlined_call_operand.hbm [shape: f32[256,512], index: 5, kind: input, shape index: {}]
  %s6 = inlined_call_operand.vmem [shape: f32[1,512], index: 6, kind: input, shape index: {}]
  %s7 = inlined_call_operand.hbm [shape: f32[16,512], index: 7, kind: output, shape index: {}]
  %s8 = sld [smem:[#allocation0]]
  $region77: #{tpu_custom_call.1} parent=0
    _
  %s10 = ssub.s32 1, %s8
  %s11 = scalar_select 0, %s10, %s8
  $region1: #{tpu_custom_call.1} parent=0
    #allocation3 [shape = 'u8[8192]{0}', space=vmem, size = 0x2000, scoped, tag = 'input window, operand 0']
    #allocation4 [shape = 's32[2]{0}', space=sflag, size = 0x8, scoped, tag = 'scoped memory for tpu_custom_call.1']
    #allocation5 [shape = 's32[2]{0}', space=sflag, size = 0x8, scoped, tag = 'scoped memory for tpu_custom_call.1']
    #allocation6 [shape = 'u8[131072]{0}', space=vmem, size = 0x20000, scoped, tag = 'input window, operand 1, single buffered']
    #allocation7 [shape = 's32[1]{0}', space=sflag, size = 0x4, scoped, tag = 'scoped memory for tpu_custom_call.1']
    #allocation8 [shape = 'u8[524288]{0}', space=vmem, size = 0x80000, scoped, tag = 'input window, operand 5']
    #allocation9 [shape = 'u8[16384]{0}', space=vmem, size = 0x4000, scoped, tag = 'output window, operand 0']
    %12 = vsyncpa [#allocation4], 0
    %s13 = scalar_lea.sflag [#allocation4], 1
    %14 = vsyncpa %s13, 0
    %15 = vsyncpa [#allocation7], 0
    %16 = vsyncpa [#allocation5], 0
    %s17 = scalar_lea.sflag [#allocation5], 1
    %18 = vsyncpa %s17, 0
    loop: start=0, step=1, limit=6
    $region2: #{tpu_custom_call.1} parent=1 // loop_pre_header
      _
    $region3: #{tpu_custom_call.1} parent=1 // loop_header
      %s20 = sphi 0, %s24
      %p21 = scmp.ge.s32.totalorder %s20, 6
      %s27 = sphi 0, %s39
      %s28 = sphi 0, %s35
      %s29 = sphi 0, %s27
      %s30 = sphi 0, %s28
      %s31 = sphi 0, %s29
      %s32 = sphi 0, %s30
      %s42 = sphi 0, %s44
      %s45 = sphi 0, %s42
      %s46 = sphi 0, %s45
      %s62 = sphi 0, %s46
      %s66 = sphi 0, %s66
      %s68 = sphi 0, %s66
      %s69 = sphi 0, %s68
      %s83 = sphi 0, %s69
      %s87 = sphi 0, %s87
      %s89 = sphi 0, %s87
      %s90 = sphi 0, %s89
      %s104 = sphi 0, %s90
      %s108 = sphi 0, %s108
      %s110 = sphi 0, %s108
      %s111 = sphi 0, %s110
      %s125 = sphi 0, %s111
      %s129 = sphi 0, %s129
      %s131 = sphi 0, %s129
      %s132 = sphi 0, %s131
      %s146 = sphi 0, %s132
      %s152 = sphi 0, %s154
      %s155 = sphi 0, %s152
      %s156 = sphi 0, %s155
      %s172 = sphi 0, %s156
      %s178 = sphi 0, %s180
      %s181 = sphi 0, %s178
      %s182 = sphi 0, %s181
      %s198 = sphi 0, %s182
      %s206 = sphi 0, %s208
      %s209 = sphi 0, %s206
      %s210 = sphi 0, %s209
      %s226 = sphi 0, %s210
    $region4: #{tpu_custom_call.1} parent=1 // loop_header_branch
      %23 = sbr.rel (%p21) target = $region8
    $region5: #{tpu_custom_call.1} parent=1 // loop_body
      %s25 = ssub.s32 %s20, 1
      %s26 = ssub.s32 %s20, 2
      %s33 = sadd.s32 1, %s28
      %p34 = scmp.ge.s32.totalorder %s33, 2
      %s35 = scalar_select %p34, 0, %s33
      %s36 = sadd.s32 1, %s27
      %s37 = scalar_select %p34, %s36, %s27
      %p38 = scmp.ge.s32.totalorder %s37, 2
      %s39 = scalar_select %p38, 0, %s37
      %s40 = ssub.s32 %s27, %s39
      %p41 = scmp.eq.s32.totalorder %s40, 0
      %s43 = sadd.s32 %s42, 1
      %s44 = scalar_select %p41, %s42, %s43
      %p47 = pneg %p41
      %p48 = scmp.eq.s32.totalorder %s20, 3
      %p49 = por %p47, %p48
      %p50 = scmp.ne.s32.totalorder %s42, %s45
      %p51 = scmp.eq.s32.totalorder %s20, 0
      %p52 = por %p50, %p51
      %p53 = scmp.ne.s32.totalorder %s42, %s45
      %p54 = scmp.eq.s32.totalorder %s25, 3
      %p55 = por %p53, %p54
      %p56 = scmp.ne.s32.totalorder %s45, %s46
      %p57 = scmp.eq.s32.totalorder %s25, 0
      %p58 = por %p56, %p57
      %p59 = scmp.ne.s32.totalorder %s45, %s46
      %p60 = scmp.eq.s32.totalorder %s26, 3
      %p61 = por %p59, %p60
      %p63 = scmp.ne.s32.totalorder %s46, %s62
      %p64 = scmp.eq.s32.totalorder %s26, 0
      %p65 = por %p63, %p64
      %s67 = sadd.s32 %s66, 1
      %p70 = scmp.eq.s32.totalorder %s20, 3
      %p71 = scmp.ne.s32.totalorder %s66, %s68
      %p72 = scmp.eq.s32.totalorder %s20, 0
      %p73 = por %p71, %p72
      %p74 = scmp.ne.s32.totalorder %s66, %s68
      %p75 = scmp.eq.s32.totalorder %s25, 3
      %p76 = por %p74, %p75
      %p77 = scmp.ne.s32.totalorder %s68, %s69
      %p78 = scmp.eq.s32.totalorder %s25, 0
      %p79 = por %p77, %p78
      %p80 = scmp.ne.s32.totalorder %s68, %s69
      %p81 = scmp.eq.s32.totalorder %s26, 3
      %p82 = por %p80, %p81
      %p84 = scmp.ne.s32.totalorder %s69, %s83
      %p85 = scmp.eq.s32.totalorder %s26, 0
      %p86 = por %p84, %p85
      %s88 = sadd.s32 %s87, 1
      %p91 = scmp.eq.s32.totalorder %s20, 3
      %p92 = scmp.ne.s32.totalorder %s87, %s89
      %p93 = scmp.eq.s32.totalorder %s20, 0
      %p94 = por %p92, %p93
      %p95 = scmp.ne.s32.totalorder %s87, %s89
      %p96 = scmp.eq.s32.totalorder %s25, 3
      %p97 = por %p95, %p96
      %p98 = scmp.ne.s32.totalorder %s89, %s90
      %p99 = scmp.eq.s32.totalorder %s25, 0
      %p100 = por %p98, %p99
      %p101 = scmp.ne.s32.totalorder %s89, %s90
      %p102 = scmp.eq.s32.totalorder %s26, 3
      %p103 = por %p101, %p102
      %p105 = scmp.ne.s32.totalorder %s90, %s104
      %p106 = scmp.eq.s32.totalorder %s26, 0
      %p107 = por %p105, %p106
      %s109 = sadd.s32 %s108, 1
      %p112 = scmp.eq.s32.totalorder %s20, 3
      %p113 = scmp.ne.s32.totalorder %s108, %s110
      %p114 = scmp.eq.s32.totalorder %s20, 0
      %p115 = por %p113, %p114
      %p116 = scmp.ne.s32.totalorder %s108, %s110
      %p117 = scmp.eq.s32.totalorder %s25, 3
      %p118 = por %p116, %p117
      %p119 = scmp.ne.s32.totalorder %s110, %s111
      %p120 = scmp.eq.s32.totalorder %s25, 0
      %p121 = por %p119, %p120
      %p122 = scmp.ne.s32.totalorder %s110, %s111
      %p123 = scmp.eq.s32.totalorder %s26, 3
      %p124 = por %p122, %p123
      %p126 = scmp.ne.s32.totalorder %s111, %s125
      %p127 = scmp.eq.s32.totalorder %s26, 0
      %p128 = por %p126, %p127
      %s130 = sadd.s32 %s129, 1
      %p133 = scmp.eq.s32.totalorder %s20, 3
      %p134 = scmp.ne.s32.totalorder %s129, %s131
      %p135 = scmp.eq.s32.totalorder %s20, 0
      %p136 = por %p134, %p135
      %p137 = scmp.ne.s32.totalorder %s129, %s131
      %p138 = scmp.eq.s32.totalorder %s25, 3
      %p139 = por %p137, %p138
      %p140 = scmp.ne.s32.totalorder %s131, %s132
      %p141 = scmp.eq.s32.totalorder %s25, 0
      %p142 = por %p140, %p141
      %p143 = scmp.ne.s32.totalorder %s131, %s132
      %p144 = scmp.eq.s32.totalorder %s26, 3
      %p145 = por %p143, %p144
      %p147 = scmp.ne.s32.totalorder %s132, %s146
      %p148 = scmp.eq.s32.totalorder %s26, 0
      %p149 = por %p147, %p148
      %s150 = ssub.s32 %s28, %s35
      %p151 = scmp.eq.s32.totalorder %s150, 0
      %s153 = sadd.s32 %s152, 1
      %s154 = scalar_select %p151, %s152, %s153
      %p157 = pneg %p151
      %p158 = scmp.eq.s32.totalorder %s20, 3
      %p159 = por %p157, %p158
      %p160 = scmp.ne.s32.totalorder %s152, %s155
      %p161 = scmp.eq.s32.totalorder %s20, 0
      %p162 = por %p160, %p161
      %p163 = scmp.ne.s32.totalorder %s152, %s155
      %p164 = scmp.eq.s32.totalorder %s25, 3
      %p165 = por %p163, %p164
      %p166 = scmp.ne.s32.totalorder %s155, %s156
      %p167 = scmp.eq.s32.totalorder %s25, 0
      %p168 = por %p166, %p167
      %p169 = scmp.ne.s32.totalorder %s155, %s156
      %p170 = scmp.eq.s32.totalorder %s26, 3
      %p171 = por %p169, %p170
      %p173 = scmp.ne.s32.totalorder %s156, %s172
      %p174 = scmp.eq.s32.totalorder %s26, 0
      %p175 = por %p173, %p174
      %s176 = ssub.s32 %s28, %s35
      %p177 = scmp.eq.s32.totalorder %s176, 0
      %s179 = sadd.s32 %s178, 1
      %s180 = scalar_select %p177, %s178, %s179
      %p183 = pneg %p177
      %p184 = scmp.eq.s32.totalorder %s20, 3
      %p185 = por %p183, %p184
      %p186 = scmp.ne.s32.totalorder %s178, %s181
      %p187 = scmp.eq.s32.totalorder %s20, 0
      %p188 = por %p186, %p187
      %p189 = scmp.ne.s32.totalorder %s178, %s181
      %p190 = scmp.eq.s32.totalorder %s25, 3
      %p191 = por %p189, %p190
      %p192 = scmp.ne.s32.totalorder %s181, %s182
      %p193 = scmp.eq.s32.totalorder %s25, 0
      %p194 = por %p192, %p193
      %p195 = scmp.ne.s32.totalorder %s181, %s182
      %p196 = scmp.eq.s32.totalorder %s26, 3
      %p197 = por %p195, %p196
      %p199 = scmp.ne.s32.totalorder %s182, %s198
      %p200 = scmp.eq.s32.totalorder %s26, 0
      %p201 = por %p199, %p200
      %s202 = ssub.s32 %s27, %s39
      %s203 = ssub.s32 %s28, %s35
      %s204 = sor.u32 %s202, %s203
      %p205 = scmp.eq.s32.totalorder %s204, 0
      %s207 = sadd.s32 %s206, 1
      %s208 = scalar_select %p205, %s206, %s207
      %p211 = pneg %p205
      %p212 = scmp.eq.s32.totalorder %s20, 3
      %p213 = por %p211, %p212
      %p214 = scmp.ne.s32.totalorder %s206, %s209
      %p215 = scmp.eq.s32.totalorder %s20, 0
      %p216 = por %p214, %p215
      %p217 = scmp.ne.s32.totalorder %s206, %s209
      %p218 = scmp.eq.s32.totalorder %s25, 3
      %p219 = por %p217, %p218
      %p220 = scmp.ne.s32.totalorder %s209, %s210
      %p221 = scmp.eq.s32.totalorder %s25, 0
      %p222 = por %p220, %p221
      %p223 = scmp.ne.s32.totalorder %s209, %s210
      %p224 = scmp.eq.s32.totalorder %s26, 3
      %p225 = por %p223, %p224
      %p227 = scmp.ne.s32.totalorder %s210, %s226
      %p228 = scmp.eq.s32.totalorder %s26, 0
      %p229 = por %p227, %p228
      %p230 = scmp.le.s32.totalorder 1, %s20
      %p231 = scmp.lt.s32.totalorder %s20, 5
      %p232 = pnand %p230, %p231
      %p233 = pneg %p232
      // Predicated region
      $region9: #{tpu_custom_call.1} parent=5 // pred_check
        _
      $region10: #{tpu_custom_call.1} parent=5 // pred_check_branch
        %235 = sbr.rel (%p232) target = $region12
      $region11: #{tpu_custom_call.1} parent=5 // pred_region
        %s236 = ssub.s32 %s20, 1
        // Predicated region
        $region13: #{tpu_custom_call.1} parent=11 // pred_check
          %p237 = pneg %p79
        $region14: #{tpu_custom_call.1} parent=11 // pred_check_branch
          %239 = sbr.rel (%p237) target = $region16
        $region15: #{tpu_custom_call.1} parent=11 // pred_region
          %s241 = ssub.s32 4096, 4096
          %242 = vsyncadd [#allocation7], %s241
          %s243 = sshll.u32 [#allocation6], 4
          %s244 = int_to_ptr.vmem [resolvable:$true] %s243
          %249 = dma.hbm_to_vmem [thread:$0]  %s1, 4096, %s244, [#allocation7], 256, 256, 16
        $region16: #{tpu_custom_call.1} parent=11 // pred_fallthru
          _
        // Predicated region
        $region17: #{tpu_custom_call.1} parent=11 // pred_check
          %p250 = pneg %p100
        $region18: #{tpu_custom_call.1} parent=11 // pred_check_branch
          %252 = sbr.rel (%p250) target = $region20
        $region19: #{tpu_custom_call.1} parent=11 // pred_region
          _
        $region20: #{tpu_custom_call.1} parent=11 // pred_fallthru
          _
        // Predicated region
        $region21: #{tpu_custom_call.1} parent=11 // pred_check
          %p253 = pneg %p121
        $region22: #{tpu_custom_call.1} parent=11 // pred_check_branch
          %255 = sbr.rel (%p253) target = $region24
        $region23: #{tpu_custom_call.1} parent=11 // pred_region
          _
        $region24: #{tpu_custom_call.1} parent=11 // pred_fallthru
          _
        // Predicated region
        $region25: #{tpu_custom_call.1} parent=11 // pred_check
          %p256 = pneg %p142
        $region26: #{tpu_custom_call.1} parent=11 // pred_check_branch
          %258 = sbr.rel (%p256) target = $region28
        $region27: #{tpu_custom_call.1} parent=11 // pred_region
          _
        $region28: #{tpu_custom_call.1} parent=11 // pred_fallthru
          _
      $region12: #{tpu_custom_call.1} parent=5 // pred_fallthru
        _
      %p259 = scmp.lt.s32.totalorder %s20, 4
      // Predicated region
      $region29: #{tpu_custom_call.1} parent=5 // pred_check
        %p260 = pneg %p259
      $region30: #{tpu_custom_call.1} parent=5 // pred_check_branch
        %262 = sbr.rel (%p260) target = $region32
      $region31: #{tpu_custom_call.1} parent=5 // pred_region
        // Predicated region
        $region33: #{tpu_custom_call.1} parent=31 // pred_check
          %p263 = pneg %p52
        $region34: #{tpu_custom_call.1} parent=31 // pred_check_branch
          %265 = sbr.rel (%p263) target = $region36
        $region35: #{tpu_custom_call.1} parent=31 // pred_region
          %s266 = sand.u32 %s20, 1
          %s267 = scalar_lea.sflag [#allocation4], %s266
          %s268 = sand.u32 %s42, 1
          %s269 = smul.addr %s268, 8
          %s270 = scalar_lea.vmem [#allocation3], %s269
          %s272 = ssub.s32 128, 128
          %273 = vsyncadd %s267, %s272
          %s274 = smul.addr %s27, 128
          %s275 = scalar_lea.hbm %s0, %s274
          %s277 = sshll.u32 %s270, 4
          %s278 = int_to_ptr.vmem [resolvable:$true] %s277
          %280 = dma.hbm_to_vmem [thread:$0]  %s275, 128, %s278, %s267
        $region36: #{tpu_custom_call.1} parent=31 // pred_fallthru
          _
        // Predicated region
        $region37: #{tpu_custom_call.1} parent=31 // pred_check
          %p281 = pneg %p162
        $region38: #{tpu_custom_call.1} parent=31 // pred_check_branch
          %283 = sbr.rel (%p281) target = $region40
        $region39: #{tpu_custom_call.1} parent=31 // pred_region
          %s284 = sand.u32 %s20, 1
          %s285 = scalar_lea.sflag [#allocation4], %s284
          %s286 = sand.u32 %s152, 1
          %s287 = smul.addr %s286, 512
          %s288 = scalar_lea.vmem [#allocation8], %s287
          %s289 = smul.u32 2, %s28
          %s291 = ssub.s32 8192, 8192
          %292 = vsyncadd %s285, %s291
          %s293 = smul.addr %s289, 128
          %s294 = scalar_lea.hbm %s5, %s293
          %s295 = sshll.u32 %s288, 4
          %s296 = int_to_ptr.vmem [resolvable:$true] %s295
          %301 = dma.hbm_to_vmem [thread:$0]  %s294, 8192, %s296, %s285, 512, 256, 16
        $region40: #{tpu_custom_call.1} parent=31 // pred_fallthru
          _
        // Predicated region
        $region41: #{tpu_custom_call.1} parent=31 // pred_check
          %p302 = pneg %p188
        $region42: #{tpu_custom_call.1} parent=31 // pred_check_branch
          %304 = sbr.rel (%p302) target = $region44
        $region43: #{tpu_custom_call.1} parent=31 // pred_region
          %s305 = smul.u32 2, %s28
          %p306 = scmp.lt.s32.totalorder %s305, 3
          %s307 = scalar_select %p306, %s305, 3
          %s308 = scalar_lea.vmem %s6, %s307
          %s309 = smul.u32 2, %s28
        $region44: #{tpu_custom_call.1} parent=31 // pred_fallthru
          _
      $region32: #{tpu_custom_call.1} parent=5 // pred_fallthru
        _
      %p310 = scmp.le.s32.totalorder 1, %s20
      %p311 = scmp.lt.s32.totalorder %s20, 5
      %p312 = pnand %p310, %p311
      %p313 = pneg %p312
      // Predicated region
      $region45: #{tpu_custom_call.1} parent=5 // pred_check
        _
      $region46: #{tpu_custom_call.1} parent=5 // pred_check_branch
        %315 = sbr.rel (%p312) target = $region48
      $region47: #{tpu_custom_call.1} parent=5 // pred_region
        %s316 = ssub.s32 %s20, 1
        %s317 = sand.u32 %s25, 1
        %s318 = scalar_lea.sflag [#allocation4], %s317
        %s319 = sand.u32 %s45, 1
        %s320 = smul.addr %s319, 8
        %s321 = scalar_lea.vmem [#allocation3], %s320
        // Predicated region
        $region49: #{tpu_custom_call.1} parent=47 // pred_check
          %p322 = pneg %p58
        $region50: #{tpu_custom_call.1} parent=47 // pred_check_branch
          %324 = sbr.rel (%p322) target = $region52
        $region51: #{tpu_custom_call.1} parent=47 // pred_region
          %325 = dma.done %s318, 128
        $region52: #{tpu_custom_call.1} parent=47 // pred_fallthru
          _
        // Predicated region
        $region53: #{tpu_custom_call.1} parent=47 // pred_check
          %p326 = pneg %p79
        $region54: #{tpu_custom_call.1} parent=47 // pred_check_branch
          %328 = sbr.rel (%p326) target = $region56
        $region55: #{tpu_custom_call.1} parent=47 // pred_region
          %329 = dma.done [#allocation7], 4096
        $region56: #{tpu_custom_call.1} parent=47 // pred_fallthru
          _
        %s330 = sand.u32 %s25, 1
        %s331 = scalar_lea.sflag [#allocation4], %s330
        %s332 = sand.u32 %s155, 1
        %s333 = smul.addr %s332, 512
        %s334 = scalar_lea.vmem [#allocation8], %s333
        // Predicated region
        $region57: #{tpu_custom_call.1} parent=47 // pred_check
          %p335 = pneg %p168
        $region58: #{tpu_custom_call.1} parent=47 // pred_check_branch
          %337 = sbr.rel (%p335) target = $region60
        $region59: #{tpu_custom_call.1} parent=47 // pred_region
          %338 = dma.done %s331, 8192
        $region60: #{tpu_custom_call.1} parent=47 // pred_fallthru
          _
        %s339 = sand.u32 %s25, 1
        %s340 = scalar_lea.sflag [#allocation4], %s339
        %s341 = sand.u32 %s45, 1
        %s342 = smul.addr %s341, 8
        %s343 = scalar_lea.vmem [#allocation3], %s342
        %p344 = pneg %p58
        %p345 = pneg %p55
        %p346 = pneg %p79
        %p347 = pneg %p76
        %p348 = pneg %p100
        %p349 = pneg %p97
        %p350 = pneg %p121
        %p351 = pneg %p118
        %p352 = pneg %p142
        %p353 = pneg %p139
        %s354 = sand.u32 %s25, 1
        %s355 = scalar_lea.sflag [#allocation4], %s354
        %s356 = sand.u32 %s155, 1
        %s357 = smul.addr %s356, 512
        %s358 = scalar_lea.vmem [#allocation8], %s357
        %p359 = pneg %p168
        %p360 = pneg %p165
        %s361 = smul.u32 2, %s30
        %p362 = scmp.lt.s32.totalorder %s361, 3
        %s363 = scalar_select %p362, %s361, 3
        %s364 = scalar_lea.vmem %s6, %s363
        %p365 = pneg %p194
        %p366 = pneg %p191
        %p367 = pneg %p222
        %p368 = pneg %p219
        %s369 = sand.u32 %s209, 1
        %s370 = scalar_lea.sflag [#allocation5], %s369
        %s371 = sand.u32 %s209, 1
        %s372 = smul.addr %s371, 16
        %s373 = scalar_lea.vmem [#allocation9], %s372
        %s374 = smul.u32 2, %s30
        %s375 = smul.u32 2, %s30
        %p376 = scmp.lt.s32.totalorder %s375, 3
        %s377 = scalar_select %p376, %s375, 3
        %s378 = scalar_lea.vmem %s6, %s377
        %s379 = smul.u32 2, %s30
        %s380 = smul.u32 2, %s30
        %p381 = scmp.eq.s32.totalorder %s30, 0
        // Predicated region
        $region61: #{tpu_custom_call.1} parent=47 // pred_check
          %p382 = pneg %p381
        $region62: #{tpu_custom_call.1} parent=47 // pred_check_branch
          %384 = sbr.rel (%p382) target = $region64
        $region63: #{tpu_custom_call.1} parent=47 // pred_region
          %v385 = vld [vmem:[%s321] sm:$0xff]
          %v386 = vld [vmem:[#allocation6] sm:$0xff]
          %v387 = vld [vmem:[#allocation6 + $0x8] sm:$0xff]
          %v388 = vld [vmem:[#allocation6 + $0x10] sm:$0xff]
          %v389 = vld [vmem:[#allocation6 + $0x18] sm:$0xff]
          %v390 = vld [vmem:[#allocation6 + $0x20] sm:$0xff]
          %v391 = vld [vmem:[#allocation6 + $0x28] sm:$0xff]
          %v392 = vld [vmem:[#allocation6 + $0x30] sm:$0xff]
          %v393 = vld [vmem:[#allocation6 + $0x38] sm:$0xff]
          %v394 = vld [vmem:[#allocation6 + $0x40] sm:$0xff]
          %v395 = vld [vmem:[#allocation6 + $0x48] sm:$0xff]
          %v396 = vld [vmem:[#allocation6 + $0x50] sm:$0xff]
          %v397 = vld [vmem:[#allocation6 + $0x58] sm:$0xff]
          %v398 = vld [vmem:[#allocation6 + $0x60] sm:$0xff]
          %v399 = vld [vmem:[#allocation6 + $0x68] sm:$0xff]
          %v400 = vld [vmem:[#allocation6 + $0x70] sm:$0xff]
          %v401 = vld [vmem:[#allocation6 + $0x78] sm:$0xff]
          %v402 = vld [vmem:[#allocation6 + $0x80] sm:$0xff]
          %v403 = vld [vmem:[#allocation6 + $0x88] sm:$0xff]
          %v404 = vld [vmem:[#allocation6 + $0x90] sm:$0xff]
          %v405 = vld [vmem:[#allocation6 + $0x98] sm:$0xff]
          %v406 = vld [vmem:[#allocation6 + $0xa0] sm:$0xff]
          %v407 = vld [vmem:[#allocation6 + $0xa8] sm:$0xff]
          %v408 = vld [vmem:[#allocation6 + $0xb0] sm:$0xff]
          %v409 = vld [vmem:[#allocation6 + $0xb8] sm:$0xff]
          %v410 = vld [vmem:[#allocation6 + $0xc0] sm:$0xff]
          %v411 = vld [vmem:[#allocation6 + $0xc8] sm:$0xff]
          %v412 = vld [vmem:[#allocation6 + $0xd0] sm:$0xff]
          %v413 = vld [vmem:[#allocation6 + $0xd8] sm:$0xff]
          %v414 = vld [vmem:[#allocation6 + $0xe0] sm:$0xff]
          %v415 = vld [vmem:[#allocation6 + $0xe8] sm:$0xff]
          %v416 = vld [vmem:[#allocation6 + $0xf0] sm:$0xff]
          %v417 = vld [vmem:[#allocation6 + $0xf8] sm:$0xff]
          %v418 = vld [vmem:[%s2] sm:$0x3]
          %v420 = vlaneseq
          %v421 = vshrl.u32 %v420, 7
          %v422 = vsub.s32 0, %v421
          %v423 = vrot.slane %v418, %v422
          %v424 = vlaneseq
          %v425 = vshrl.u32 %v424, 7
          %v426 = vsub.s32 1, %v425
          %v427 = vrot.slane %v418, %v426
          %430 = vmatprep.subr.mxu0 %v387
          %431 = vmatpush1.msra.mxu0 %v386
          %432 = vmatprep.subr.mxu0 %v389
          %433 = vmatpush1.msra.mxu0 %v388
          %434 = vmatprep.subr.mxu0 %v391
          %435 = vmatpush1.msra.mxu0 %v390
          %436 = vmatprep.subr.mxu0 %v393
          %437 = vmatpush1.msra.mxu0 %v392
          %438 = vmatprep.subr.mxu0 %v395
          %439 = vmatpush1.msra.mxu0 %v394
          %440 = vmatprep.subr.mxu0 %v397
          %441 = vmatpush1.msra.mxu0 %v396
          %442 = vmatprep.subr.mxu0 %v399
          %443 = vmatpush1.msra.mxu0 %v398
          %444 = vmatprep.subr.mxu0 %v401
          %445 = vmatpush1.msra.mxu0 %v400
          %446 = vmatprep.subr.mxu0 %v403
          %447 = vmatpush1.msra.mxu0 %v402
          %448 = vmatprep.subr.mxu0 %v405
          %449 = vmatpush1.msra.mxu0 %v404
          %450 = vmatprep.subr.mxu0 %v407
          %451 = vmatpush1.msra.mxu0 %v406
          %452 = vmatprep.subr.mxu0 %v409
          %453 = vmatpush1.msra.mxu0 %v408
          %454 = vmatprep.subr.mxu0 %v411
          %455 = vmatpush1.msra.mxu0 %v410
          %456 = vmatprep.subr.mxu0 %v413
          %457 = vmatpush1.msra.mxu0 %v412
          %458 = vmatprep.subr.mxu0 %v415
          %459 = vmatpush1.msra.mxu0 %v414
          %460 = vmatprep.subr.mxu0 %v417
          %461 = vmatpush1.msra.mxu0 %v416
          %462 = vmatprep.subr.mxu0 0.0
          %463 = vmatpush1.msra.mxu0 0.0
          %464 = vmatprep.subr.mxu0 0.0
          %465 = vmatpush1.msra.mxu0 0.0
          %466 = vmatprep.subr.mxu0 0.0
          %467 = vmatpush1.msra.mxu0 0.0
          %468 = vmatprep.subr.mxu0 0.0
          %469 = vmatpush1.msra.mxu0 0.0
          %470 = vmatprep.subr.mxu0 0.0
          %471 = vmatpush1.msra.mxu0 0.0
          %472 = vmatprep.subr.mxu0 0.0
          %473 = vmatpush1.msra.mxu0 0.0
          %474 = vmatprep.subr.mxu0 0.0
          %475 = vmatpush1.msra.mxu0 0.0
          %476 = vmatprep.subr.mxu0 0.0
          %477 = vmatpush1.msra.mxu0 0.0
          %478 = vmatprep.subr.mxu0 0.0
          %479 = vmatpush1.msra.mxu0 0.0
          %480 = vmatprep.subr.mxu0 0.0
          %481 = vmatpush1.msra.mxu0 0.0
          %482 = vmatprep.subr.mxu0 0.0
          %483 = vmatpush1.msra.mxu0 0.0
          %484 = vmatprep.subr.mxu0 0.0
          %485 = vmatpush1.msra.mxu0 0.0
          %486 = vmatprep.subr.mxu0 0.0
          %487 = vmatpush1.msra.mxu0 0.0
          %488 = vmatprep.subr.mxu0 0.0
          %489 = vmatpush1.msra.mxu0 0.0
          %490 = vmatprep.subr.mxu0 0.0
          %491 = vmatpush1.msra.mxu0 0.0
          %492 = vmatprep.subr.mxu0 0.0
          %493 = vmatpush1.msra.mxu0 0.0
          %494 = vmatprep.mubr.f32.mxu0 0.0
          %495 = vmatmul.mubr.f32.gmra.mrb[0].mxu0 %v385
          %v496 = vpop.f32.mrb[0].mxu0
          %v497 = vadd.f32 %v423, %v496
          %v498 = vpop.f32.mrb[0].mxu0
          %v499 = vadd.f32 %v427, %v498
          %500 = vdwg.mxu0
          %v501 = vmul.f32 %v497, 0.5
          %v502 = vmul.f32 %v499, 0.5
          %v503 = vmul.f32 %v497, 0.044715
          %v504 = vmul.f32 %v499, 0.044715
          %v505 = vmul.f32 %v503, %v497
          %v506 = vmul.f32 %v504, %v499
          %v507 = vmul.f32 %v505, %v497
          %v508 = vmul.f32 %v506, %v499
          %v509 = vadd.f32 %v497, %v507
          %v510 = vadd.f32 %v499, %v508
          %v511 = vmul.f32 %v509, 0.7978846
          %v512 = vmul.f32 %v510, 0.7978846
          %v513 = vtanh.pop %v511
          %v514 = vtanh.pop %v512
          %v515 = vadd.f32 %v513, 1.0
          %v516 = vadd.f32 %v514, 1.0
          %v517 = vmul.f32 %v501, %v515
          %v518 = vmul.f32 %v502, %v516
          %v519 = vadd.f32 %v517, %v518
          %520 = vadd.xlane.f32.xlu0 %v519
          %v521 = vpop.xlane.xlu0 %520
          %v522 = vrcp.pop 256.0
          %v523 = vmul.f32 %v521, %v522
          %v524 = vmul.f32 %v517, %v517
          %v525 = vmul.f32 %v518, %v518
          %v526 = vadd.f32 %v524, %v525
          %527 = vadd.xlane.f32.xlu0 %v526
          %v528 = vpop.xlane.xlu0 %527
          %v529 = vmul.f32 %v528, %v522
          %v530 = vmul.f32 %v523, %v523
          %v531 = vsub.f32 %v529, %v530
          %v532 = vsub.f32 %v517, %v523
          %v533 = vsub.f32 %v518, %v523
          %v534 = vadd.f32 %v531, 1e-12
          %v535 = vrsqrt.pop %v534
          %v536 = vmul.f32 %v532, %v535
          %v537 = vmul.f32 %v533, %v535
          %v538 = vld [vmem:[%s3] sm:$0x3]
          %v540 = vlaneseq
          %v541 = vshrl.u32 %v540, 7
          %v542 = vsub.s32 0, %v541
          %v543 = vrot.slane %v538, %v542
          %v544 = vlaneseq
          %v545 = vshrl.u32 %v544, 7
          %v546 = vsub.s32 1, %v545
          %v547 = vrot.slane %v538, %v546
          %v550 = vmul.f32 %v536, %v543
          %v551 = vmul.f32 %v537, %v547
          %v552 = vld [vmem:[%s4] sm:$0x3]
          %v554 = vlaneseq
          %v555 = vshrl.u32 %v554, 7
          %v556 = vsub.s32 0, %v555
          %v557 = vrot.slane %v552, %v556
          %v558 = vlaneseq
          %v559 = vshrl.u32 %v558, 7
          %v560 = vsub.s32 1, %v559
          %v561 = vrot.slane %v552, %v560
          %v564 = vadd.f32 %v550, %v557
          %v565 = vadd.f32 %v551, %v561
          %566 = vst [vmem:[#allocation2] sm:$0xff] %v564
          %567 = vst [vmem:[#allocation2 + $0x8] sm:$0xff] %v565
        $region64: #{tpu_custom_call.1} parent=47 // pred_fallthru
          _
        %v568 = vld [vmem:[#allocation2] sm:$0xff]
        %v569 = vld [vmem:[#allocation2 + $0x8] sm:$0xff]
        %v570 = vld [vmem:[%s334] sm:$0xff]
        %v571 = vld [vmem:[%s334 + $0x8] sm:$0xff]
        %v572 = vld [vmem:[%s334 + $0x10] sm:$0xff]
        %v573 = vld [vmem:[%s334 + $0x18] sm:$0xff]
        %v574 = vld [vmem:[%s334 + $0x20] sm:$0xff]
        %v575 = vld [vmem:[%s334 + $0x28] sm:$0xff]
        %v576 = vld [vmem:[%s334 + $0x30] sm:$0xff]
        %v577 = vld [vmem:[%s334 + $0x38] sm:$0xff]
        %v578 = vld [vmem:[%s334 + $0x40] sm:$0xff]
        %v579 = vld [vmem:[%s334 + $0x48] sm:$0xff]
        %v580 = vld [vmem:[%s334 + $0x50] sm:$0xff]
        %v581 = vld [vmem:[%s334 + $0x58] sm:$0xff]
        %v582 = vld [vmem:[%s334 + $0x60] sm:$0xff]
        %v583 = vld [vmem:[%s334 + $0x68] sm:$0xff]
        %v584 = vld [vmem:[%s334 + $0x70] sm:$0xff]
        %v585 = vld [vmem:[%s334 + $0x78] sm:$0xff]
        %v586 = vld [vmem:[%s334 + $0x80] sm:$0xff]
        %v587 = vld [vmem:[%s334 + $0x88] sm:$0xff]
        %v588 = vld [vmem:[%s334 + $0x90] sm:$0xff]
        %v589 = vld [vmem:[%s334 + $0x98] sm:$0xff]
        %v590 = vld [vmem:[%s334 + $0xa0] sm:$0xff]
        %v591 = vld [vmem:[%s334 + $0xa8] sm:$0xff]
        %v592 = vld [vmem:[%s334 + $0xb0] sm:$0xff]
        %v593 = vld [vmem:[%s334 + $0xb8] sm:$0xff]
        %v594 = vld [vmem:[%s334 + $0xc0] sm:$0xff]
        %v595 = vld [vmem:[%s334 + $0xc8] sm:$0xff]
        %v596 = vld [vmem:[%s334 + $0xd0] sm:$0xff]
        %v597 = vld [vmem:[%s334 + $0xd8] sm:$0xff]
        %v598 = vld [vmem:[%s334 + $0xe0] sm:$0xff]
        %v599 = vld [vmem:[%s334 + $0xe8] sm:$0xff]
        %v600 = vld [vmem:[%s334 + $0xf0] sm:$0xff]
        %v601 = vld [vmem:[%s334 + $0xf8] sm:$0xff]
        %v602 = vld [vmem:[%s334 + $0x100] sm:$0xff]
        %v603 = vld [vmem:[%s334 + $0x108] sm:$0xff]
        %v604 = vld [vmem:[%s334 + $0x110] sm:$0xff]
        %v605 = vld [vmem:[%s334 + $0x118] sm:$0xff]
        %v606 = vld [vmem:[%s334 + $0x120] sm:$0xff]
        %v607 = vld [vmem:[%s334 + $0x128] sm:$0xff]
        %v608 = vld [vmem:[%s334 + $0x130] sm:$0xff]
        %v609 = vld [vmem:[%s334 + $0x138] sm:$0xff]
        %v610 = vld [vmem:[%s334 + $0x140] sm:$0xff]
        %v611 = vld [vmem:[%s334 + $0x148] sm:$0xff]
        %v612 = vld [vmem:[%s334 + $0x150] sm:$0xff]
        %v613 = vld [vmem:[%s334 + $0x158] sm:$0xff]
        %v614 = vld [vmem:[%s334 + $0x160] sm:$0xff]
        %v615 = vld [vmem:[%s334 + $0x168] sm:$0xff]
        %v616 = vld [vmem:[%s334 + $0x170] sm:$0xff]
        %v617 = vld [vmem:[%s334 + $0x178] sm:$0xff]
        %v618 = vld [vmem:[%s334 + $0x180] sm:$0xff]
        %v619 = vld [vmem:[%s334 + $0x188] sm:$0xff]
        %v620 = vld [vmem:[%s334 + $0x190] sm:$0xff]
        %v621 = vld [vmem:[%s334 + $0x198] sm:$0xff]
        %v622 = vld [vmem:[%s334 + $0x1a0] sm:$0xff]
        %v623 = vld [vmem:[%s334 + $0x1a8] sm:$0xff]
        %v624 = vld [vmem:[%s334 + $0x1b0] sm:$0xff]
        %v625 = vld [vmem:[%s334 + $0x1b8] sm:$0xff]
        %v626 = vld [vmem:[%s334 + $0x1c0] sm:$0xff]
        %v627 = vld [vmem:[%s334 + $0x1c8] sm:$0xff]
        %v628 = vld [vmem:[%s334 + $0x1d0] sm:$0xff]
        %v629 = vld [vmem:[%s334 + $0x1d8] sm:$0xff]
        %v630 = vld [vmem:[%s334 + $0x1e0] sm:$0xff]
        %v631 = vld [vmem:[%s334 + $0x1e8] sm:$0xff]
        %v632 = vld [vmem:[%s334 + $0x1f0] sm:$0xff]
        %v633 = vld [vmem:[%s334 + $0x1f8] sm:$0xff]
        %v634 = vld [vmem:[%s378] sm:$0x3]
        %v636 = vlaneseq
        %v637 = vshrl.u32 %v636, 7
        %v638 = vsub.s32 0, %v637
        %v639 = vrot.slane %v634, %v638
        %v640 = vlaneseq
        %v641 = vshrl.u32 %v640, 7
        %v642 = vsub.s32 1, %v641
        %v643 = vrot.slane %v634, %v642
        %646 = vmatprep.subr.mxu0 %v571
        %647 = vmatpush1.msra.mxu0 %v570
        %648 = vmatprep.subr.mxu0 %v573
        %649 = vmatpush1.msra.mxu0 %v572
        %650 = vmatprep.subr.mxu0 %v575
        %651 = vmatpush1.msra.mxu0 %v574
        %652 = vmatprep.subr.mxu0 %v577
        %653 = vmatpush1.msra.mxu0 %v576
        %654 = vmatprep.subr.mxu0 %v579
        %655 = vmatpush1.msra.mxu0 %v578
        %656 = vmatprep.subr.mxu0 %v581
        %657 = vmatpush1.msra.mxu0 %v580
        %658 = vmatprep.subr.mxu0 %v583
        %659 = vmatpush1.msra.mxu0 %v582
        %660 = vmatprep.subr.mxu0 %v585
        %661 = vmatpush1.msra.mxu0 %v584
        %662 = vmatprep.subr.mxu0 %v587
        %663 = vmatpush1.msra.mxu0 %v586
        %664 = vmatprep.subr.mxu0 %v589
        %665 = vmatpush1.msra.mxu0 %v588
        %666 = vmatprep.subr.mxu0 %v591
        %667 = vmatpush1.msra.mxu0 %v590
        %668 = vmatprep.subr.mxu0 %v593
        %669 = vmatpush1.msra.mxu0 %v592
        %670 = vmatprep.subr.mxu0 %v595
        %671 = vmatpush1.msra.mxu0 %v594
        %672 = vmatprep.subr.mxu0 %v597
        %673 = vmatpush1.msra.mxu0 %v596
        %674 = vmatprep.subr.mxu0 %v599
        %675 = vmatpush1.msra.mxu0 %v598
        %676 = vmatprep.subr.mxu0 %v601
        %677 = vmatpush1.msra.mxu0 %v600
        %678 = vmatprep.subr.mxu0 %v603
        %679 = vmatpush1.msra.mxu0 %v602
        %680 = vmatprep.subr.mxu0 %v605
        %681 = vmatpush1.msra.mxu0 %v604
        %682 = vmatprep.subr.mxu0 %v607
        %683 = vmatpush1.msra.mxu0 %v606
        %684 = vmatprep.subr.mxu0 %v609
        %685 = vmatpush1.msra.mxu0 %v608
        %686 = vmatprep.subr.mxu0 %v611
        %687 = vmatpush1.msra.mxu0 %v610
        %688 = vmatprep.subr.mxu0 %v613
        %689 = vmatpush1.msra.mxu0 %v612
        %690 = vmatprep.subr.mxu0 %v615
        %691 = vmatpush1.msra.mxu0 %v614
        %692 = vmatprep.subr.mxu0 %v617
        %693 = vmatpush1.msra.mxu0 %v616
        %694 = vmatprep.subr.mxu0 %v619
        %695 = vmatpush1.msra.mxu0 %v618
        %696 = vmatprep.subr.mxu0 %v621
        %697 = vmatpush1.msra.mxu0 %v620
        %698 = vmatprep.subr.mxu0 %v623
        %699 = vmatpush1.msra.mxu0 %v622
        %700 = vmatprep.subr.mxu0 %v625
        %701 = vmatpush1.msra.mxu0 %v624
        %702 = vmatprep.subr.mxu0 %v627
        %703 = vmatpush1.msra.mxu0 %v626
        %704 = vmatprep.subr.mxu0 %v629
        %705 = vmatpush1.msra.mxu0 %v628
        %706 = vmatprep.subr.mxu0 %v631
        %707 = vmatpush1.msra.mxu0 %v630
        %708 = vmatprep.subr.mxu0 %v633
        %709 = vmatpush1.msra.mxu0 %v632
        %710 = vmatprep.mubr.f32.mxu0 %v569
        %711 = vmatmul.mubr.f32.gmra.mrb[0].mxu0 %v568
        %v712 = vpop.f32.mrb[0].mxu0
        %v713 = vadd.f32 %v639, %v712
        %v714 = vpop.f32.mrb[0].mxu0
        %v715 = vadd.f32 %v643, %v714
        %716 = vdwg.mxu0
        %717 = vst [vmem:[%s373] sm:$0xff] %v713
        %718 = vst [vmem:[%s373 + $0x8] sm:$0xff] %v715
        %s719 = sand.u32 %s209, 1
        %s720 = scalar_lea.sflag [#allocation5], %s719
        %s721 = sand.u32 %s209, 1
        %s722 = smul.addr %s721, 16
        %s723 = scalar_lea.vmem [#allocation9], %s722
        // Predicated region
        $region65: #{tpu_custom_call.1} parent=47 // pred_check
          %p724 = pneg %p219
        $region66: #{tpu_custom_call.1} parent=47 // pred_check_branch
          %726 = sbr.rel (%p724) target = $region68
        $region67: #{tpu_custom_call.1} parent=47 // pred_region
          %s727 = smul.u32 2, %s30
          %s729 = ssub.s32 256, 256
          %730 = vsyncadd %s720, %s729
          %s731 = smul.addr %s29, 4
          %s732 = sadd.s32 %s727, %s731
          %s733 = smul.addr %s732, 128
          %s734 = scalar_lea.hbm %s7, %s733
          %s736 = sshll.u32 %s723, 4
          %s737 = int_to_ptr.vmem [resolvable:$true] %s736
          %739 = dma.vmem_to_hbm [thread:$0]  %s737, 256, %s734, %s720
        $region68: #{tpu_custom_call.1} parent=47 // pred_fallthru
          _
      $region48: #{tpu_custom_call.1} parent=5 // pred_fallthru
        _
      %p740 = scmp.le.s32.totalorder 2, %s20
      // Predicated region
      $region69: #{tpu_custom_call.1} parent=5 // pred_check
        %p741 = pneg %p740
      $region70: #{tpu_custom_call.1} parent=5 // pred_check_branch
        %743 = sbr.rel (%p741) target = $region72
      $region71: #{tpu_custom_call.1} parent=5 // pred_region
        %s744 = ssub.s32 %s20, 2
        // Predicated region
        $region73: #{tpu_custom_call.1} parent=71 // pred_check
          %p745 = pneg %p225
        $region74: #{tpu_custom_call.1} parent=71 // pred_check_branch
          %747 = sbr.rel (%p745) target = $region76
        $region75: #{tpu_custom_call.1} parent=71 // pred_region
          %s748 = sand.u32 %s210, 1
          %s749 = scalar_lea.sflag [#allocation5], %s748
          %s750 = sand.u32 %s210, 1
          %s751 = smul.addr %s750, 16
          %s752 = scalar_lea.vmem [#allocation9], %s751
          %753 = dma.done %s749, 256
        $region76: #{tpu_custom_call.1} parent=71 // pred_fallthru
          _
      $region72: #{tpu_custom_call.1} parent=5 // pred_fallthru
        _
    $region6: #{tpu_custom_call.1} parent=1 // loop_footer
      %s24 = sadd.s32 1, %s20
    $region7: #{tpu_custom_call.1} parent=1 // loop_footer_branch
      %19 = sbr.rel target = $region3
    $region8: #{tpu_custom_call.1} parent=1 // loop_exit
      _
    %754 = vsyncpa [#allocation4], 1
    %s755 = scalar_lea.sflag [#allocation4], 1
    %756 = vsyncpa %s755, 1
    %757 = vsyncpa [#allocation7], 1
    %758 = vsyncpa [#allocation5], 1
    %s759 = scalar_lea.sflag [#allocation5], 1
    %760 = vsyncpa %s759, 1

</llo_original>
